<compile_context>
chip_gen: v7x
topology: tpu7x:2x2x1
jax: 0.10.0
libtpu: 0.0.40
codegen_flags: <defaults>
</compile_context>

<pallas_src>
import math
import functools

import jax
import jax.numpy as jnp
from jax import lax
from jax.experimental import pallas as pl
from jax.experimental.pallas import tpu as pltpu


def _round_up(v, m):
    return ((v + m - 1) // m) * m


def _gemm_kernel(w_ref, x_ref, o_ref, acc_ref):
    """One tile: (Cout_pad, kt) @ (kt, TM) -> f32 accumulate -> (Cout_pad, TM)."""
    k = pl.program_id(2)

    @pl.when(k == 0)
    def _():
        acc_ref[...] = jnp.zeros_like(acc_ref)

    acc_ref[...] += jnp.dot(w_ref[...], x_ref[...],
                            preferred_element_type=jnp.float32)

    @pl.when(k == pl.num_programs(2) - 1)
    def _():
        o_ref[...] = acc_ref[...].astype(o_ref.dtype)


def _vmem_info():
    """(data budget bytes, physical VMEM bytes) with a safe fallback."""
    phys = 128 * 1024 * 1024
    try:
        info = pltpu.get_tpu_info()
        phys = int(getattr(info, "vmem_capacity_bytes", phys)) or phys
    except Exception:
        pass
    # Keep the pipelined data footprint well under physical capacity
    # (v7x: 64 MiB -> ~21 MiB budget; v5e/v6e: 128 MiB -> 40 MiB budget).
    return min(phys // 3, 40 * 1024 * 1024), phys


def _footprint_bytes(tm, kt, cout_pad):
    # 2x patch buffers + 2x output buffers + 2x weight buffers (BlockSpec inputs
    # are double-buffered even with a constant index_map) + f32 accumulator.
    return 4 * (2 * kt * tm + 2 * cout_pad * tm + 2 * cout_pad * kt + cout_pad * tm)


def _pick_tiles(k_needed, cout_pad, m, budget_bytes, max_tm=2048):
    """Pick (tm, kt, k_pad): lane-dense TM (mult of 128), K tile (full or mult of 128)."""
    k8 = _round_up(max(k_needed, 1), 8)
    m128 = _round_up(m, 128)

    tm = max(128, (min(max_tm, m128) // 128) * 128)
    kt = k8
    while tm > 128 and _footprint_bytes(tm, kt, cout_pad) > budget_bytes:
        tm = max(128, ((tm // 2) // 128) * 128)

    if _footprint_bytes(tm, kt, cout_pad) <= budget_bytes:
        return tm, kt, k8

    # K-tiling fallback: when kt < K_pad the last dim of the weight block must
    # be a multiple of 128.
    kt = max(128, ((_round_up(k8, 128) // 2) // 128) * 128)
    while kt > 128 and _footprint_bytes(tm, kt, cout_pad) > budget_bytes:
        kt = max(128, ((kt // 2) // 128) * 128)
    k_pad = _round_up(k_needed, kt)
    return tm, kt, k_pad


def conv_transpose2d_pallas(x, weight, stride=(1, 1), padding=(0, 0)):
    """x: (B, Cin, H, W) f32 NCHW. weight: (Cin, Cout, KH, KW). Returns NCHW."""
    B, Cin, H, W = x.shape
    _, Cout, KH, KW = weight.shape
    sh, sw = stride
    ph, pw = padding

    OH = (H - 1) * sh - 2 * ph + KH
    OW = (W - 1) * sw - 2 * pw + KW
    OHq = -(-OH // sh)   # rows per phase (uniform, padded)
    OWq = -(-OW // sw)

    # ---- static per-phase tap geometry + global padding -----------------------
    # Output oh = rh + sh*i receives kernel rows kh = rho_h + sh*jh and reads
    # input rows ih = i + dlt_h - jh (zero outside [0, H)).  Same for columns.
    phases = []
    pad_top = pad_bot = pad_lft = pad_rgt = 0
    for rh in range(sh):
        rho_h = (rh + ph) % sh
        dlt_h = (rh + ph) // sh
        kh_list = list(range(rho_h, KH, sh))
        for rw in range(sw):
            rho_w = (rw + pw) % sw
            dlt_w = (rw + pw) // sw
            kw_list = list(range(rho_w, KW, sw))
            phases.append((dlt_h, dlt_w, kh_list, kw_list))
            if kh_list and kw_list:
                pad_top = max(pad_top, (len(kh_list) - 1) - dlt_h)
                pad_bot = max(pad_bot, OHq + dlt_h - H)
                pad_lft = max(pad_lft, (len(kw_list) - 1) - dlt_w)
                pad_rgt = max(pad_rgt, OWq + dlt_w - W)
    pad_top, pad_bot = max(pad_top, 0), max(pad_bot, 0)
    pad_lft, pad_rgt = max(pad_lft, 0), max(pad_rgt, 0)

    P = sh * sw
    t_max = max((len(kh) * len(kw) for (_, _, kh, kw) in phases), default=0)
    k_max = max(t_max * Cin, 1)
    cout_pad = _round_up(Cout, 8)          # sublane-aligned output channels (f32)
    M = B * OHq * OWq                      # uniform per-phase GEMM width

    budget, phys = _vmem_info()
    tm, kt, k_pad = _pick_tiles(k_max, cout_pad, M, budget)

    # v7x megacore: keep >= 2 parallel grid steps whenever possible.
    m128 = _round_up(M, 128)
    if P * (_round_up(M, tm) // tm) < 2 and m128 >= 256:
        tm = max(128, ((m128 // 2) // 128) * 128)
    m_pad = _round_up(M, tm)

    # ---- pad the input ONCE (hoisted out of the phase loop) --------------------
    x_cbhw = jnp.transpose(x, (1, 0, 2, 3))                     # (Cin, B, H, W)
    xp = lax.pad(x_cbhw, jnp.array(0, x.dtype),
                 ((0, 0, 0), (0, 0, 0),
                  (pad_top, pad_bot, 0), (pad_lft, pad_rgt, 0)))

    # ---- fused phase-major patches (P, K_pad, M_pad) + folded weights ----------
    patch_slabs, weight_slabs = [], []
    for (dlt_h, dlt_w, kh_list, kw_list) in phases:
        taps, wts = [], []
        for jh, kh in enumerate(kh_list):
            r0 = dlt_h - jh + pad_top
            for jw, kw in enumerate(kw_list):
                c0 = dlt_w - jw + pad_lft
                taps.append(lax.slice(xp, (0, 0, r0, c0),
                                      (Cin, B, r0 + OHq, c0 + OWq)))
                wts.append(weight[:, :, kh, kw])                # (Cin, Cout)
        if taps:
            k_ph = len(taps) * Cin
            p_slab = jnp.stack(taps, axis=0).reshape(k_ph, M)           # (K_ph, M)
            w_slab = jnp.transpose(jnp.stack(wts, axis=0),
                                   (2, 0, 1)).reshape(Cout, k_ph)       # (Cout, K_ph)
        else:   # phase receives no taps -> zero weights, zero output
            k_ph = 0
            p_slab = jnp.zeros((0, M), x.dtype)
            w_slab = jnp.zeros((Cout, 0), weight.dtype)
        patch_slabs.append(jnp.pad(p_slab, ((0, k_pad - k_ph), (0, m_pad - M))))
        weight_slabs.append(jnp.pad(w_slab, ((0, cout_pad - Cout), (0, k_pad - k_ph))))

    patches = jnp.stack(patch_slabs, axis=0)     # (P, K_pad, M_pad)
    w_fold = jnp.stack(weight_slabs, axis=0)     # (P, Cout_pad, K_pad)

    n_m = m_pad // tm
    n_k = k_pad // kt
    footprint = _footprint_bytes(tm, kt, cout_pad)
    vmem_limit = int(min(max(footprint + 8 * 1024 * 1024, 24 * 1024 * 1024),
                         max(phys - 8 * 1024 * 1024, 16 * 1024 * 1024)))

    # TODO(synk): keep f32 compute; bf16 inputs (f32 accumulate) halve HBM bytes
    # on v6e/v7x but need Cout_pad rounded to 16 and looser validation tolerance.
    out_pm = pl.pallas_call(
        _gemm_kernel,
        out_shape=jax.ShapeDtypeStruct((P, cout_pad, m_pad), x.dtype),
        grid_spec=pltpu.PrefetchScalarGridSpec(
            num_scalar_prefetch=0,
            grid=(P, n_m, n_k),
            in_specs=[
                # folded weights: resident per phase (constant across the m axis)
                pl.BlockSpec((None, cout_pad, kt), lambda p, m, k: (p, 0, k)),
                # lane-dense patch tiles
                pl.BlockSpec((None, kt, tm), lambda p, m, k: (p, k, m)),
            ],
            out_specs=pl.BlockSpec((None, cout_pad, tm), lambda p, m, k: (p, 0, m)),
            scratch_shapes=[pltpu.VMEM((cout_pad, tm), jnp.float32)],
        ),
        compiler_params=pltpu.CompilerParams(
            dimension_semantics=("parallel", "parallel", "arbitrary"),
            vmem_limit_bytes=vmem_limit,
        ),
    )(w_fold, patches)

    # ---- single pixel-shuffle back to NCHW -------------------------------------
    y = out_pm[:, :Cout, :M].reshape(sh, sw, Cout, B, OHq, OWq)
    y = jnp.transpose(y, (3, 2, 4, 0, 5, 1)).reshape(B, Cout, OHq * sh, OWq * sw)
    return y[:, :, :OH, :OW]


def reference_conv_transpose2d(x, weight, stride, padding):
    """Pure-JAX reference (lax conv with lhs dilation)."""
    Cin, Cout, KH, KW = weight.shape
    sh, sw = stride
    ph, pw = padding
    w_oihw = jnp.transpose(weight[:, :, ::-1, ::-1], (1, 0, 2, 3))  # (Cout, Cin, KH, KW)
    return lax.conv_general_dilated(
        x, w_oihw,
        window_strides=(1, 1),
        padding=((KH - 1 - ph, KH - 1 - ph), (KW - 1 - pw, KW - 1 - pw)),
        lhs_dilation=(sh, sw),
        dimension_numbers=("NCHW", "OIHW", "NCHW"))


if __name__ == "__main__":
    # Small shapes consistent with the module.
    B, Cin, H, W = 2, 4, 16, 16
    Cout = 8
    kernel_size = (3, 3)
    stride = (2, 2)
    padding = (1, 1)

    key = jax.random.PRNGKey(0)
    kx, kw = jax.random.split(key)

    x = jax.random.normal(kx, (B, Cin, H, W), dtype=jnp.float32)

    # Deterministic kaiming_uniform_(a=2.236)-style init for weight (Cin, Cout, KH, KW).
    a = 2.236
    fan_in = Cout * kernel_size[0] * kernel_size[1]
    gain = math.sqrt(2.0 / (1.0 + a * a))
    bound = gain * math.sqrt(3.0 / fan_in)
    weight = jax.random.uniform(kw, (Cin, Cout, *kernel_size),
                                dtype=jnp.float32, minval=-bound, maxval=bound)

    fwd = jax.jit(functools.partial(conv_transpose2d_pallas,
                                    stride=stride, padding=padding))
    out = fwd(x, weight)
    out = jax.block_until_ready(out)

    ref = reference_conv_transpose2d(x, weight, stride, padding)
    assert out.shape == ref.shape, (out.shape, ref.shape)
    assert jnp.allclose(out, ref, atol=1e-4, rtol=1e-4), "mismatch vs reference"

    print("KERNEL_OK")
</pallas_src>

<mosaic_0001>
module attributes {stable_mosaic.version = 11 : i64} {
  func.func @_gemm_kernel(%arg0: i32, %arg1: i32, %arg2: i32, %arg3: memref<1x8x16xf32, #tpu.memory_space<vmem>>, %arg4: memref<1x16x512xf32, #tpu.memory_space<vmem>>, %arg5: memref<1x8x512xf32, #tpu.memory_space<vmem>>, %arg6: memref<8x512xf32, #tpu.memory_space<vmem>>) attributes {dimension_semantics = [#tpu.dimension_semantics<parallel>, #tpu.dimension_semantics<parallel>, #tpu.dimension_semantics<arbitrary>], iteration_bounds = array<i64: 4, 1, 1>, scalar_prefetch = 0 : i64, scratch_operands = 1 : i64, tpu.core_type = #tpu.core_type<tc>, window_params = [{transform_indices = @transform_0, window_bounds = array<i64: 1, 8, 16>}, {transform_indices = @transform_1, window_bounds = array<i64: 1, 16, 512>}, {transform_indices = @transform_2, window_bounds = array<i64: 1, 8, 512>}]} {
    %c0_i32 = arith.constant 0 : i32
    %0 = arith.cmpi eq, %arg2, %c0_i32 : i32
    %1 = arith.extui %0 : i1 to i32
    %c0_i32_0 = arith.constant 0 : i32
    %2 = arith.cmpi ne, %1, %c0_i32_0 : i32
    scf.if %2 {
      %cst_12 = arith.constant 0.000000e+00 : f32
      %14 = vector.broadcast %cst_12 : f32 to vector<8x512xf32>
      %c0_13 = arith.constant 0 : index
      %c0_14 = arith.constant 0 : index
      %15 = vector.load %arg6[%c0_13, %c0_14] : memref<8x512xf32, #tpu.memory_space<vmem>>, vector<8x512xf32>
      tpu.vector_store %arg6[%c0_13, %c0_14], %14 {strides = array<i32>} : memref<8x512xf32, #tpu.memory_space<vmem>>, vector<8x512xf32>,
    } else {
    }
    %c0 = arith.constant 0 : index
    %c0_1 = arith.constant 0 : index
    %3 = vector.load %arg6[%c0, %c0_1] : memref<8x512xf32, #tpu.memory_space<vmem>>, vector<8x512xf32>
    %c0_2 = arith.constant 0 : index
    %c0_3 = arith.constant 0 : index
    %c0_4 = arith.constant 0 : index
    %4 = vector.load %arg3[%c0_2, %c0_3, %c0_4] : memref<1x8x16xf32, #tpu.memory_space<vmem>>, vector<1x8x16xf32>
    %5 = vector.shape_cast %4 : vector<1x8x16xf32> to vector<8x16xf32>
    %c0_5 = arith.constant 0 : index
    %c0_6 = arith.constant 0 : index
    %c0_7 = arith.constant 0 : index
    %6 = vector.load %arg4[%c0_5, %c0_6, %c0_7] : memref<1x16x512xf32, #tpu.memory_space<vmem>>, vector<1x16x512xf32>
    %7 = vector.shape_cast %6 : vector<1x16x512xf32> to vector<16x512xf32>
    %cst = arith.constant dense<0.000000e+00> : vector<8x512xf32>
    %8 = tpu.matmul %5, %7, %cst {dimension_numbers = #tpu.dot_dimension_numbers<[1], [0], [0], [1], [0, 0, 1, 1], [], []>} : vector<8x16xf32>, vector<16x512xf32>, vector<8x512xf32> -> vector<8x512xf32>
    %9 = arith.addf %3, %8 : vector<8x512xf32>
    %c0_8 = arith.constant 0 : index
    %c0_9 = arith.constant 0 : index
    %10 = vector.load %arg6[%c0_8, %c0_9] : memref<8x512xf32, #tpu.memory_space<vmem>>, vector<8x512xf32>
    tpu.vector_store %arg6[%c0_8, %c0_9], %9 {strides = array<i32>} : memref<8x512xf32, #tpu.memory_space<vmem>>, vector<8x512xf32>,
    %c0_i32_10 = arith.constant 0 : i32
    %11 = arith.cmpi eq, %arg2, %c0_i32_10 : i32
    %12 = arith.extui %11 : i1 to i32
    %c0_i32_11 = arith.constant 0 : i32
    %13 = arith.cmpi ne, %12, %c0_i32_11 : i32
    scf.if %13 {
      %c0_12 = arith.constant 0 : index
      %c0_13 = arith.constant 0 : index
      %14 = vector.load %arg6[%c0_12, %c0_13] : memref<8x512xf32, #tpu.memory_space<vmem>>, vector<8x512xf32>
      %c0_14 = arith.constant 0 : index
      %c0_15 = arith.constant 0 : index
      %c0_16 = arith.constant 0 : index
      %15 = vector.load %arg5[%c0_14, %c0_15, %c0_16] : memref<1x8x512xf32, #tpu.memory_space<vmem>>, vector<1x8x512xf32>
      %16 = vector.shape_cast %15 : vector<1x8x512xf32> to vector<8x512xf32>
      %17 = vector.shape_cast %14 : vector<8x512xf32> to vector<1x8x512xf32>
      tpu.vector_store %arg5[%c0_14, %c0_15, %c0_16], %17 {strides = array<i32>} : memref<1x8x512xf32, #tpu.memory_space<vmem>>, vector<1x8x512xf32>,
    } else {
    }
    return
  }
  func.func @transform_0(%arg0: i32, %arg1: i32, %arg2: i32) -> (i32, i32, i32) {
    %c0_i32 = arith.constant 0 : i32
    %c0_i32_0 = arith.constant 0 : i32
    return %arg0, %c0_i32, %arg2 : i32, i32, i32
  }
  func.func @transform_1(%arg0: i32, %arg1: i32, %arg2: i32) -> (i32, i32, i32) {
    %c0_i32 = arith.constant 0 : i32
    return %arg0, %arg2, %arg1 : i32, i32, i32
  }
  func.func @transform_2(%arg0: i32, %arg1: i32, %arg2: i32) -> (i32, i32, i32) {
    %c0_i32 = arith.constant 0 : i32
    %c0_i32_0 = arith.constant 0 : i32
    return %arg0, %c0_i32, %arg1 : i32, i32, i32
  }
}

</mosaic_0001>

<llo_original>
// kernel: conv_transpose2d_pallas.1
$region0: #{conv_transpose2d_pallas.1}
  #allocation0 [shape = 'u32[]', space=smem, size = 0x4, offset = 0x4, fixed_abs, tag = 'smem constant byte address 0x4 - core index']
  #allocation1 [shape = 'u32[144,128]{1,0:T(1,128)}', space=vmem, size = 0x12000, scoped, tag = 'internal scratch']
  #allocation2 [shape = 'f32[8,512]{1,0:T(8,128)}', space=vmem, size = 0x4000, scoped, tag = 'scratch operand']
  %s0 = inlined_call_operand.vmem [shape: f32[4,8,16], index: 0, kind: input, shape index: {}]
  %s1 = inlined_call_operand.vmem [shape: f32[4,16,512], index: 1, kind: input, shape index: {}]
  %s2 = inlined_call_operand.vmem [shape: f32[4,8,512], index: 2, kind: output, shape index: {}]
  %s3 = sld [smem:[#allocation0]]
  $region49: #{conv_transpose2d_pallas.1} parent=0
    _
  %s5 = ssub.s32 1, %s3
  %s6 = scalar_select 0, %s5, %s3
  loop: start=0, step=1, limit=6
  $region2: #{conv_transpose2d_pallas.1} parent=0 // loop_pre_header
    _
  $region3: #{conv_transpose2d_pallas.1} parent=0 // loop_header
    %s8 = sphi 0, %s12
    %p9 = scmp.ge.s32.totalorder %s8, 6
    %s15 = sphi 0, %s34
    %s16 = sphi 0, %s30
    %s17 = sphi 0, %s26
    %s18 = sphi 0, %s15
    %s19 = sphi 0, %s16
    %s20 = sphi 0, %s17
    %s21 = sphi 0, %s18
    %s22 = sphi 0, %s19
    %s23 = sphi 0, %s20
    %s39 = sphi 0, %s41
    %s42 = sphi 0, %s39
    %s43 = sphi 0, %s42
    %s59 = sphi 0, %s43
    %s69 = sphi 0, %s71
    %s72 = sphi 0, %s69
    %s73 = sphi 0, %s72
    %s89 = sphi 0, %s73
    %s97 = sphi 0, %s99
    %s100 = sphi 0, %s97
    %s101 = sphi 0, %s100
    %s117 = sphi 0, %s101
  $region4: #{conv_transpose2d_pallas.1} parent=0 // loop_header_branch
    %11 = sbr.rel (%p9) target = $region8
  $region5: #{conv_transpose2d_pallas.1} parent=0 // loop_body
    %s13 = ssub.s32 %s8, 1
    %s14 = ssub.s32 %s8, 2
    %s24 = sadd.s32 1, %s17
    %p25 = scmp.ge.s32.totalorder %s24, 1
    %s26 = scalar_select %p25, 0, %s24
    %s27 = sadd.s32 1, %s16
    %s28 = scalar_select %p25, %s27, %s16
    %p29 = scmp.ge.s32.totalorder %s28, 1
    %s30 = scalar_select %p29, 0, %s28
    %s31 = sadd.s32 1, %s15
    %s32 = scalar_select %p29, %s31, %s15
    %p33 = scmp.ge.s32.totalorder %s32, 4
    %s34 = scalar_select %p33, 0, %s32
    %s35 = ssub.s32 %s15, %s34
    %s36 = ssub.s32 %s17, %s26
    %s37 = sor.u32 %s35, %s36
    %p38 = scmp.eq.s32.totalorder %s37, 0
    %s40 = sadd.s32 %s39, 1
    %s41 = scalar_select %p38, %s39, %s40
    %p44 = pneg %p38
    %p45 = scmp.eq.s32.totalorder %s8, 3
    %p46 = por %p44, %p45
    %p47 = scmp.ne.s32.totalorder %s39, %s42
    %p48 = scmp.eq.s32.totalorder %s8, 0
    %p49 = por %p47, %p48
    %p50 = scmp.ne.s32.totalorder %s39, %s42
    %p51 = scmp.eq.s32.totalorder %s13, 3
    %p52 = por %p50, %p51
    %p53 = scmp.ne.s32.totalorder %s42, %s43
    %p54 = scmp.eq.s32.totalorder %s13, 0
    %p55 = por %p53, %p54
    %p56 = scmp.ne.s32.totalorder %s42, %s43
    %p57 = scmp.eq.s32.totalorder %s14, 3
    %p58 = por %p56, %p57
    %p60 = scmp.ne.s32.totalorder %s43, %s59
    %p61 = scmp.eq.s32.totalorder %s14, 0
    %p62 = por %p60, %p61
    %s63 = ssub.s32 %s15, %s34
    %s64 = ssub.s32 %s17, %s26
    %s65 = sor.u32 %s63, %s64
    %s66 = ssub.s32 %s16, %s30
    %s67 = sor.u32 %s65, %s66
    %p68 = scmp.eq.s32.totalorder %s67, 0
    %s70 = sadd.s32 %s69, 1
    %s71 = scalar_select %p68, %s69, %s70
    %p74 = pneg %p68
    %p75 = scmp.eq.s32.totalorder %s8, 3
    %p76 = por %p74, %p75
    %p77 = scmp.ne.s32.totalorder %s69, %s72
    %p78 = scmp.eq.s32.totalorder %s8, 0
    %p79 = por %p77, %p78
    %p80 = scmp.ne.s32.totalorder %s69, %s72
    %p81 = scmp.eq.s32.totalorder %s13, 3
    %p82 = por %p80, %p81
    %p83 = scmp.ne.s32.totalorder %s72, %s73
    %p84 = scmp.eq.s32.totalorder %s13, 0
    %p85 = por %p83, %p84
    %p86 = scmp.ne.s32.totalorder %s72, %s73
    %p87 = scmp.eq.s32.totalorder %s14, 3
    %p88 = por %p86, %p87
    %p90 = scmp.ne.s32.totalorder %s73, %s89
    %p91 = scmp.eq.s32.totalorder %s14, 0
    %p92 = por %p90, %p91
    %s93 = ssub.s32 %s15, %s34
    %s94 = ssub.s32 %s16, %s30
    %s95 = sor.u32 %s93, %s94
    %p96 = scmp.eq.s32.totalorder %s95, 0
    %s98 = sadd.s32 %s97, 1
    %s99 = scalar_select %p96, %s97, %s98
    %p102 = pneg %p96
    %p103 = scmp.eq.s32.totalorder %s8, 3
    %p104 = por %p102, %p103
    %p105 = scmp.ne.s32.totalorder %s97, %s100
    %p106 = scmp.eq.s32.totalorder %s8, 0
    %p107 = por %p105, %p106
    %p108 = scmp.ne.s32.totalorder %s97, %s100
    %p109 = scmp.eq.s32.totalorder %s13, 3
    %p110 = por %p108, %p109
    %p111 = scmp.ne.s32.totalorder %s100, %s101
    %p112 = scmp.eq.s32.totalorder %s13, 0
    %p113 = por %p111, %p112
    %p114 = scmp.ne.s32.totalorder %s100, %s101
    %p115 = scmp.eq.s32.totalorder %s14, 3
    %p116 = por %p114, %p115
    %p118 = scmp.ne.s32.totalorder %s101, %s117
    %p119 = scmp.eq.s32.totalorder %s14, 0
    %p120 = por %p118, %p119
    %p121 = scmp.le.s32.totalorder 1, %s8
    %p122 = scmp.lt.s32.totalorder %s8, 5
    %p123 = pnand %p121, %p122
    %p124 = pneg %p123
    // Predicated region
    $region9: #{conv_transpose2d_pallas.1} parent=5 // pred_check
      _
    $region10: #{conv_transpose2d_pallas.1} parent=5 // pred_check_branch
      %126 = sbr.rel (%p123) target = $region12
    $region11: #{conv_transpose2d_pallas.1} parent=5 // pred_region
      %s127 = ssub.s32 %s8, 1
    $region12: #{conv_transpose2d_pallas.1} parent=5 // pred_fallthru
      _
    %p128 = scmp.lt.s32.totalorder %s8, 4
    // Predicated region
    $region13: #{conv_transpose2d_pallas.1} parent=5 // pred_check
      %p129 = pneg %p128
    $region14: #{conv_transpose2d_pallas.1} parent=5 // pred_check_branch
      %131 = sbr.rel (%p129) target = $region16
    $region15: #{conv_transpose2d_pallas.1} parent=5 // pred_region
      // Predicated region
      $region17: #{conv_transpose2d_pallas.1} parent=15 // pred_check
        %p132 = pneg %p49
      $region18: #{conv_transpose2d_pallas.1} parent=15 // pred_check_branch
        %134 = sbr.rel (%p132) target = $region20
      $region19: #{conv_transpose2d_pallas.1} parent=15 // pred_region
        %p135 = scmp.lt.s32.totalorder %s15, 3
        %s136 = scalar_select %p135, %s15, 3
        %p137 = scmp.lt.s32.totalorder %s17, 0
        %s138 = scalar_select %p137, %s17, 0
        %s139 = sadd.s32 %s138, %s136
        %s140 = smul.addr %s139, 8
        %s141 = scalar_lea.vmem %s0, %s140
      $region20: #{conv_transpose2d_pallas.1} parent=15 // pred_fallthru
        _
      // Predicated region
      $region21: #{conv_transpose2d_pallas.1} parent=15 // pred_check
        %p142 = pneg %p79
      $region22: #{conv_transpose2d_pallas.1} parent=15 // pred_check_branch
        %144 = sbr.rel (%p142) target = $region24
      $region23: #{conv_transpose2d_pallas.1} parent=15 // pred_region
        %s145 = smul.u32 2, %s17
        %s146 = smul.u32 4, %s16
        %p147 = scmp.lt.s32.totalorder %s15, 3
        %s148 = scalar_select %p147, %s15, 3
        %p149 = scmp.lt.s32.totalorder %s145, 1
        %s150 = scalar_select %p149, %s145, 1
        %p151 = scmp.lt.s32.totalorder %s146, 3
        %s152 = scalar_select %p151, %s146, 3
        %s153 = smul.addr %s150, 4
        %s154 = sadd.s32 %s152, %s153
        %s155 = smul.addr %s148, 8
        %s156 = sadd.s32 %s154, %s155
        %s157 = smul.addr %s156, 8
        %s158 = scalar_lea.vmem %s1, %s157
        %s159 = smul.u32 2, %s17
        %s160 = smul.u32 4, %s16
      $region24: #{conv_transpose2d_pallas.1} parent=15 // pred_fallthru
        _
    $region16: #{conv_transpose2d_pallas.1} parent=5 // pred_fallthru
      _
    %p161 = scmp.le.s32.totalorder 1, %s8
    %p162 = scmp.lt.s32.totalorder %s8, 5
    %p163 = pnand %p161, %p162
    %p164 = pneg %p163
    // Predicated region
    $region25: #{conv_transpose2d_pallas.1} parent=5 // pred_check
      _
    $region26: #{conv_transpose2d_pallas.1} parent=5 // pred_check_branch
      %166 = sbr.rel (%p163) target = $region28
    $region27: #{conv_transpose2d_pallas.1} parent=5 // pred_region
      %s167 = ssub.s32 %s8, 1
      %p168 = scmp.lt.s32.totalorder %s18, 3
      %s169 = scalar_select %p168, %s18, 3
      %p170 = scmp.lt.s32.totalorder %s20, 0
      %s171 = scalar_select %p170, %s20, 0
      %s172 = sadd.s32 %s171, %s169
      %s173 = smul.addr %s172, 8
      %s174 = scalar_lea.vmem %s0, %s173
      %p175 = pneg %p55
      %p176 = pneg %p52
      %s177 = smul.u32 2, %s20
      %s178 = smul.u32 4, %s19
      %p179 = scmp.lt.s32.totalorder %s18, 3
      %s180 = scalar_select %p179, %s18, 3
      %p181 = scmp.lt.s32.totalorder %s177, 1
      %s182 = scalar_select %p181, %s177, 1
      %p183 = scmp.lt.s32.totalorder %s178, 3
      %s184 = scalar_select %p183, %s178, 3
      %s185 = smul.addr %s182, 4
      %s186 = sadd.s32 %s184, %s185
      %s187 = smul.addr %s180, 8
      %s188 = sadd.s32 %s186, %s187
      %s189 = smul.addr %s188, 8
      %s190 = scalar_lea.vmem %s1, %s189
      %p191 = pneg %p85
      %p192 = pneg %p82
      %p193 = pneg %p113
      %p194 = pneg %p110
      %s195 = smul.u32 4, %s19
      %p196 = scmp.lt.s32.totalorder %s18, 3
      %s197 = scalar_select %p196, %s18, 3
      %p198 = scmp.lt.s32.totalorder %s195, 3
      %s199 = scalar_select %p198, %s195, 3
      %s200 = smul.addr %s197, 4
      %s201 = sadd.s32 %s199, %s200
      %s202 = smul.addr %s201, 8
      %s203 = scalar_lea.vmem %s2, %s202
      %p204 = scmp.lt.s32.totalorder %s18, 3
      %s205 = scalar_select %p204, %s18, 3
      %p206 = scmp.lt.s32.totalorder %s20, 0
      %s207 = scalar_select %p206, %s20, 0
      %s208 = sadd.s32 %s207, %s205
      %s209 = smul.addr %s208, 8
      %s210 = scalar_lea.vmem %s0, %s209
      %s211 = smul.u32 2, %s20
      %s212 = smul.u32 4, %s19
      %p213 = scmp.lt.s32.totalorder %s18, 3
      %s214 = scalar_select %p213, %s18, 3
      %p215 = scmp.lt.s32.totalorder %s211, 1
      %s216 = scalar_select %p215, %s211, 1
      %p217 = scmp.lt.s32.totalorder %s212, 3
      %s218 = scalar_select %p217, %s212, 3
      %s219 = smul.addr %s216, 4
      %s220 = sadd.s32 %s218, %s219
      %s221 = smul.addr %s214, 8
      %s222 = sadd.s32 %s220, %s221
      %s223 = smul.addr %s222, 8
      %s224 = scalar_lea.vmem %s1, %s223
      %s225 = smul.u32 2, %s20
      %s226 = smul.u32 4, %s19
      %s227 = smul.u32 4, %s19
      %p228 = scmp.lt.s32.totalorder %s18, 3
      %s229 = scalar_select %p228, %s18, 3
      %p230 = scmp.lt.s32.totalorder %s227, 3
      %s231 = scalar_select %p230, %s227, 3
      %s232 = smul.addr %s229, 4
      %s233 = sadd.s32 %s231, %s232
      %s234 = smul.addr %s233, 8
      %s235 = scalar_lea.vmem %s2, %s234
      %s236 = smul.u32 4, %s19
      %p237 = scmp.eq.s32.totalorder %s20, 0
      // Predicated region
      $region29: #{conv_transpose2d_pallas.1} parent=27 // pred_check
        %p238 = pneg %p237
      $region30: #{conv_transpose2d_pallas.1} parent=27 // pred_check_branch
        %240 = sbr.rel (%p238) target = $region32
      $region31: #{conv_transpose2d_pallas.1} parent=27 // pred_region
        %241 = vst [vmem:[#allocation2] sm:$0xff] 0.0
        %242 = vst [vmem:[#allocation2 + $0x8] sm:$0xff] 0.0
        %243 = vst [vmem:[#allocation2 + $0x10] sm:$0xff] 0.0
        %244 = vst [vmem:[#allocation2 + $0x18] sm:$0xff] 0.0
      $region32: #{conv_transpose2d_pallas.1} parent=27 // pred_fallthru
        _
      %v245 = vld [vmem:[#allocation2] sm:$0xff]
      %v246 = vld [vmem:[#allocation2 + $0x8] sm:$0xff]
      %v247 = vld [vmem:[#allocation2 + $0x10] sm:$0xff]
      %v248 = vld [vmem:[#allocation2 + $0x18] sm:$0xff]
      %v249 = vld [vmem:[%s210] sm:$0xff]
      %v250 = vld [vmem:[%s224] sm:$0xff]
      %v251 = vld [vmem:[%s224 + $0x8] sm:$0xff]
      %v252 = vld [vmem:[%s224 + $0x10] sm:$0xff]
      %v253 = vld [vmem:[%s224 + $0x18] sm:$0xff]
      %v254 = vld [vmem:[%s224 + $0x20] sm:$0xff]
      %v255 = vld [vmem:[%s224 + $0x28] sm:$0xff]
      %v256 = vld [vmem:[%s224 + $0x30] sm:$0xff]
      %v257 = vld [vmem:[%s224 + $0x38] sm:$0xff]
      %vm258 = vcmask 130048
      %v260 = vsel %vm258, %v249, 0
      %262 = vmatprep.subr.mxu0 %v251
      %263 = vmatpush1.msra.mxu0 %v250
      %264 = vmatprep.subr.mxu0 %v255
      %265 = vmatpush1.msra.mxu0 %v254
      %266 = vmatprep.subr.mxu0 0.0
      %267 = vmatpush1.msra.mxu0 0.0
      %268 = vmatprep.subr.mxu0 0.0
      %269 = vmatpush1.msra.mxu0 0.0
      %270 = vmatprep.subr.mxu0 0.0
      %271 = vmatpush1.msra.mxu0 0.0
      %272 = vmatprep.subr.mxu0 0.0
      %273 = vmatpush1.msra.mxu0 0.0
      %274 = vmatprep.subr.mxu0 0.0
      %275 = vmatpush1.msra.mxu0 0.0
      %276 = vmatprep.subr.mxu0 0.0
      %277 = vmatpush1.msra.mxu0 0.0
      %278 = vmatprep.subr.mxu0 0.0
      %279 = vmatpush1.msra.mxu0 0.0
      %280 = vmatprep.subr.mxu0 0.0
      %281 = vmatpush1.msra.mxu0 0.0
      %282 = vmatprep.subr.mxu0 0.0
      %283 = vmatpush1.msra.mxu0 0.0
      %284 = vmatprep.subr.mxu0 0.0
      %285 = vmatpush1.msra.mxu0 0.0
      %286 = vmatprep.subr.mxu0 0.0
      %287 = vmatpush1.msra.mxu0 0.0
      %288 = vmatprep.subr.mxu0 0.0
      %289 = vmatpush1.msra.mxu0 0.0
      %290 = vmatprep.subr.mxu0 0.0
      %291 = vmatpush1.msra.mxu0 0.0
      %292 = vmatprep.subr.mxu0 0.0
      %293 = vmatpush1.msra.mxu0 0.0
      %294 = vmatprep.subr.mxu0 0.0
      %295 = vmatpush1.msra.mxu0 0.0
      %296 = vmatprep.subr.mxu0 0.0
      %297 = vmatpush1.msra.mxu0 0.0
      %298 = vmatprep.subr.mxu0 0.0
      %299 = vmatpush1.msra.mxu0 0.0
      %300 = vmatprep.subr.mxu0 0.0
      %301 = vmatpush1.msra.mxu0 0.0
      %302 = vmatprep.subr.mxu0 0.0
      %303 = vmatpush1.msra.mxu0 0.0
      %304 = vmatprep.subr.mxu0 0.0
      %305 = vmatpush1.msra.mxu0 0.0
      %306 = vmatprep.subr.mxu0 0.0
      %307 = vmatpush1.msra.mxu0 0.0
      %308 = vmatprep.subr.mxu0 0.0
      %309 = vmatpush1.msra.mxu0 0.0
      %310 = vmatprep.subr.mxu0 0.0
      %311 = vmatpush1.msra.mxu0 0.0
      %312 = vmatprep.subr.mxu0 0.0
      %313 = vmatpush1.msra.mxu0 0.0
      %314 = vmatprep.subr.mxu0 0.0
      %315 = vmatpush1.msra.mxu0 0.0
      %316 = vmatprep.subr.mxu0 0.0
      %317 = vmatpush1.msra.mxu0 0.0
      %318 = vmatprep.subr.mxu0 0.0
      %319 = vmatpush1.msra.mxu0 0.0
      %320 = vmatprep.subr.mxu0 0.0
      %321 = vmatpush1.msra.mxu0 0.0
      %322 = vmatprep.subr.mxu0 0.0
      %323 = vmatpush1.msra.mxu0 0.0
      %324 = vmatprep.subr.mxu0 0.0
      %325 = vmatpush1.msra.mxu0 0.0
      %326 = vmatprep.mubr.f32.mxu0 0.0
      %327 = vmatmul.mubr.f32.gmra.mrb[0].mxu0 %v260
      %v328 = vpop.f32.mrb[0].mxu0
      %v329 = vadd.f32 0.0, %v328
      %v330 = vpop.f32.mrb[0].mxu0
      %v331 = vadd.f32 0.0, %v330
      %332 = vdwg.mxu0
      %333 = vmatprep.subr.mxu0 %v253
      %334 = vmatpush1.msra.mxu0 %v252
      %335 = vmatprep.subr.mxu0 %v257
      %336 = vmatpush1.msra.mxu0 %v256
      %337 = vmatprep.subr.mxu0 0.0
      %338 = vmatpush1.msra.mxu0 0.0
      %339 = vmatprep.subr.mxu0 0.0
      %340 = vmatpush1.msra.mxu0 0.0
      %341 = vmatprep.subr.mxu0 0.0
      %342 = vmatpush1.msra.mxu0 0.0
      %343 = vmatprep.subr.mxu0 0.0
      %344 = vmatpush1.msra.mxu0 0.0
      %345 = vmatprep.subr.mxu0 0.0
      %346 = vmatpush1.msra.mxu0 0.0
      %347 = vmatprep.subr.mxu0 0.0
      %348 = vmatpush1.msra.mxu0 0.0
      %349 = vmatprep.subr.mxu0 0.0
      %350 = vmatpush1.msra.mxu0 0.0
      %351 = vmatprep.subr.mxu0 0.0
      %352 = vmatpush1.msra.mxu0 0.0
      %353 = vmatprep.subr.mxu0 0.0
      %354 = vmatpush1.msra.mxu0 0.0
      %355 = vmatprep.subr.mxu0 0.0
      %356 = vmatpush1.msra.mxu0 0.0
      %357 = vmatprep.subr.mxu0 0.0
      %358 = vmatpush1.msra.mxu0 0.0
      %359 = vmatprep.subr.mxu0 0.0
      %360 = vmatpush1.msra.mxu0 0.0
      %361 = vmatprep.subr.mxu0 0.0
      %362 = vmatpush1.msra.mxu0 0.0
      %363 = vmatprep.subr.mxu0 0.0
      %364 = vmatpush1.msra.mxu0 0.0
      %365 = vmatprep.subr.mxu0 0.0
      %366 = vmatpush1.msra.mxu0 0.0
      %367 = vmatprep.subr.mxu0 0.0
      %368 = vmatpush1.msra.mxu0 0.0
      %369 = vmatprep.subr.mxu0 0.0
      %370 = vmatpush1.msra.mxu0 0.0
      %371 = vmatprep.subr.mxu0 0.0
      %372 = vmatpush1.msra.mxu0 0.0
      %373 = vmatprep.subr.mxu0 0.0
      %374 = vmatpush1.msra.mxu0 0.0
      %375 = vmatprep.subr.mxu0 0.0
      %376 = vmatpush1.msra.mxu0 0.0
      %377 = vmatprep.subr.mxu0 0.0
      %378 = vmatpush1.msra.mxu0 0.0
      %379 = vmatprep.subr.mxu0 0.0
      %380 = vmatpush1.msra.mxu0 0.0
      %381 = vmatprep.subr.mxu0 0.0
      %382 = vmatpush1.msra.mxu0 0.0
      %383 = vmatprep.subr.mxu0 0.0
      %384 = vmatpush1.msra.mxu0 0.0
      %385 = vmatprep.subr.mxu0 0.0
      %386 = vmatpush1.msra.mxu0 0.0
      %387 = vmatprep.subr.mxu0 0.0
      %388 = vmatpush1.msra.mxu0 0.0
      %389 = vmatprep.subr.mxu0 0.0
      %390 = vmatpush1.msra.mxu0 0.0
      %391 = vmatprep.subr.mxu0 0.0
      %392 = vmatpush1.msra.mxu0 0.0
      %393 = vmatprep.subr.mxu0 0.0
      %394 = vmatpush1.msra.mxu0 0.0
      %395 = vmatprep.subr.mxu0 0.0
      %396 = vmatpush1.msra.mxu0 0.0
      %397 = vmatprep.mubr.f32.mxu0 0.0
      %398 = vmatmul.mubr.f32.gmra.mrb[0].mxu0 %v260
      %v399 = vpop.f32.mrb[0].mxu0
      %v400 = vadd.f32 0.0, %v399
      %v401 = vpop.f32.mrb[0].mxu0
      %v402 = vadd.f32 0.0, %v401
      %403 = vdwg.mxu0
      %v404 = vadd.f32 %v245, %v329
      %v405 = vadd.f32 %v246, %v331
      %v406 = vadd.f32 %v247, %v400
      %v407 = vadd.f32 %v248, %v402
      %408 = vst [vmem:[#allocation2] sm:$0xff] %v404
      %409 = vst [vmem:[#allocation2 + $0x8] sm:$0xff] %v405
      %410 = vst [vmem:[#allocation2 + $0x10] sm:$0xff] %v406
      %411 = vst [vmem:[#allocation2 + $0x18] sm:$0xff] %v407
      // Predicated region
      $region33: #{conv_transpose2d_pallas.1} parent=27 // pred_check
        %p412 = pneg %p237
      $region34: #{conv_transpose2d_pallas.1} parent=27 // pred_check_branch
        %414 = sbr.rel (%p412) target = $region36
      $region35: #{conv_transpose2d_pallas.1} parent=27 // pred_region
        %v415 = vld [vmem:[#allocation2] sm:$0xff]
        %v416 = vld [vmem:[#allocation2 + $0x8] sm:$0xff]
        %v417 = vld [vmem:[#allocation2 + $0x10] sm:$0xff]
        %v418 = vld [vmem:[#allocation2 + $0x18] sm:$0xff]
        %419 = vst [vmem:[%s235] sm:$0xff] %v415
        %420 = vst [vmem:[%s235 + $0x8] sm:$0xff] %v416
        %421 = vst [vmem:[%s235 + $0x10] sm:$0xff] %v417
        %422 = vst [vmem:[%s235 + $0x18] sm:$0xff] %v418
      $region36: #{conv_transpose2d_pallas.1} parent=27 // pred_fallthru
        _
      %s423 = smul.u32 4, %s19
      %p424 = scmp.lt.s32.totalorder %s18, 3
      %s425 = scalar_select %p424, %s18, 3
      %p426 = scmp.lt.s32.totalorder %s423, 3
      %s427 = scalar_select %p426, %s423, 3
      %s428 = smul.addr %s425, 4
      %s429 = sadd.s32 %s427, %s428
      %s430 = smul.addr %s429, 8
      %s431 = scalar_lea.vmem %s2, %s430
      // Predicated region
      $region37: #{conv_transpose2d_pallas.1} parent=27 // pred_check
        %p432 = pneg %p110
      $region38: #{conv_transpose2d_pallas.1} parent=27 // pred_check_branch
        %434 = sbr.rel (%p432) target = $region40
      $region39: #{conv_transpose2d_pallas.1} parent=27 // pred_region
        %s435 = smul.u32 4, %s19
      $region40: #{conv_transpose2d_pallas.1} parent=27 // pred_fallthru
        _
    $region28: #{conv_transpose2d_pallas.1} parent=5 // pred_fallthru
      _
    %p436 = scmp.le.s32.totalorder 2, %s8
    // Predicated region
    $region41: #{conv_transpose2d_pallas.1} parent=5 // pred_check
      %p437 = pneg %p436
    $region42: #{conv_transpose2d_pallas.1} parent=5 // pred_check_branch
      %439 = sbr.rel (%p437) target = $region44
    $region43: #{conv_transpose2d_pallas.1} parent=5 // pred_region
      %s440 = ssub.s32 %s8, 2
      // Predicated region
      $region45: #{conv_transpose2d_pallas.1} parent=43 // pred_check
        %p441 = pneg %p116
      $region46: #{conv_transpose2d_pallas.1} parent=43 // pred_check_branch
        %443 = sbr.rel (%p441) target = $region48
      $region47: #{conv_transpose2d_pallas.1} parent=43 // pred_region
        %s444 = smul.u32 4, %s22
        %p445 = scmp.lt.s32.totalorder %s21, 3
        %s446 = scalar_select %p445, %s21, 3
        %p447 = scmp.lt.s32.totalorder %s444, 3
        %s448 = scalar_select %p447, %s444, 3
        %s449 = smul.addr %s446, 4
        %s450 = sadd.s32 %s448, %s449
        %s451 = smul.addr %s450, 8
        %s452 = scalar_lea.vmem %s2, %s451
      $region48: #{conv_transpose2d_pallas.1} parent=43 // pred_fallthru
        _
    $region44: #{conv_transpose2d_pallas.1} parent=5 // pred_fallthru
      _
  $region6: #{conv_transpose2d_pallas.1} parent=0 // loop_footer
    %s12 = sadd.s32 1, %s8
  $region7: #{conv_transpose2d_pallas.1} parent=0 // loop_footer_branch
    %7 = sbr.rel target = $region3
  $region8: #{conv_transpose2d_pallas.1} parent=0 // loop_exit
    _

</llo_original>
